<compile_context>
chip_gen: v5e
topology: v5e:2x2
jax: 0.10.0
libtpu: 0.0.40
codegen_flags: <defaults>
</compile_context>

<pallas_src>
import functools

import jax
import jax.numpy as jnp
from jax.experimental import pallas as pl
from jax.experimental.pallas import tpu as pltpu

IN_FEATURES = 384
HIDDEN = 16
OUT_FEATURES = 1
_LANE = 128
_VMEM_LIMIT_BYTES = 32 * 1024 * 1024  # safe on v5e / v6e / v7x


def _round_up(v, m):
    return (v + m - 1) // m * m


def _mlp_kernel(x_ref, w1_ref, b1_ref, w2_ref, b2_ref, o_ref):
    # x_ref:  (384, tn) activation tile (native feature-major layout)
    # w1_ref: (16, 384) first linear weight (nn.Linear layout), dtype == x dtype
    # b1_ref: (16, 1)   f32
    # w2_ref: (16, 1)   f32 second linear weight as a column
    # b2_ref: (1, 1)    f32
    # o_ref:  (1, tn)   lane-dense f32 output tile
    h = jnp.dot(w1_ref[...], x_ref[...],
                preferred_element_type=jnp.float32)                  # (16, tn), MXU, f32 acc
    h = jnp.maximum(h + b1_ref[...], 0.0)                            # bias + ReLU (VPU)
    # Second linear (16 -> 1): broadcast-mul + small sublane reduce.
    y = jnp.sum(h * w2_ref[...], axis=0, keepdims=True) + b2_ref[...]  # (1, tn)
    o_ref[...] = jax.nn.sigmoid(y).astype(o_ref.dtype)               # Sigmoid (EUP)


def _x_spec(tn_eff, num_steps):
    """Streamed activation BlockSpec; 3-deep buffered when the grid is long."""
    if num_steps >= 3 and hasattr(pl, "Buffered"):
        try:
            return pl.BlockSpec((IN_FEATURES, tn_eff), lambda i: (0, i),
                                pipeline_mode=pl.Buffered(3))
        except TypeError:  # older jax without pipeline_mode -> default 2-deep
            pass
    return pl.BlockSpec((IN_FEATURES, tn_eff), lambda i: (0, i))


@functools.partial(jax.jit, static_argnames=("tn",))
def mlp_model_forward(features, w1, b1, w2, b2, *, tn=2048):
    """features: (384, H, W) -> (1, H, W) float32, matching MLPModel.forward."""
    c, h, w = features.shape
    assert c == IN_FEATURES
    assert tn % _LANE == 0, "lane tile must be a multiple of 128"
    n = h * w

    # Native layout: (C, H, W) -> (C, N).  No transpose, no pad of the big
    # activation; the ragged edge block is handled by Pallas directly.
    x = features.reshape(c, n)

    # Lane-tile selection:
    #   - n fits in one 128-lane chunk: single tiny step.
    #   - otherwise aim for >= 2 grid steps (v7x megacore sharding), capped at
    #     the requested tile size.
    if n <= _LANE:
        tn_eff = _LANE
    elif n <= 2 * tn:
        tn_eff = min(tn, _round_up((n + 1) // 2, _LANE))
    else:
        tn_eff = tn
    num_steps = pl.cdiv(n, tn_eff)

    # Small resident parameters (constant index_map -> fetched once, stay in VMEM).
    w1_r = w1.astype(features.dtype)                      # tiny; enables bf16 activations
    b1_r = b1.reshape(HIDDEN, 1).astype(jnp.float32)
    w2_r = w2.reshape(HIDDEN, OUT_FEATURES).astype(jnp.float32)   # == W2.T for a (1,16) weight
    b2_r = b2.reshape(OUT_FEATURES, 1).astype(jnp.float32)

    y = pl.pallas_call(
        _mlp_kernel,
        out_shape=jax.ShapeDtypeStruct((OUT_FEATURES, n), jnp.float32),
        grid_spec=pltpu.PrefetchScalarGridSpec(
            num_scalar_prefetch=0,
            grid=(num_steps,),
            in_specs=[
                _x_spec(tn_eff, num_steps),                              # streamed
                pl.BlockSpec((HIDDEN, IN_FEATURES), lambda i: (0, 0)),   # resident
                pl.BlockSpec((HIDDEN, 1), lambda i: (0, 0)),             # resident
                pl.BlockSpec((HIDDEN, 1), lambda i: (0, 0)),             # resident
                pl.BlockSpec((1, 1), lambda i: (0, 0)),                  # resident
            ],
            out_specs=pl.BlockSpec((OUT_FEATURES, tn_eff), lambda i: (0, i)),
        ),
        compiler_params=pltpu.CompilerParams(
            dimension_semantics=("parallel",),
            vmem_limit_bytes=_VMEM_LIMIT_BYTES),
    )(x, w1_r, b1_r, w2_r, b2_r)

    # (1, N) -> (1, H, W): identical to reshape(H, W, 1).permute(2, 0, 1) of the
    # row-major (N, 1) result.
    return y.reshape(OUT_FEATURES, h, w)


def _init_params(key):
    """Deterministic parameter init matching nn.Linear shapes."""
    k1, k2, k3, k4 = jax.random.split(key, 4)
    bound1 = 1.0 / (IN_FEATURES ** 0.5)
    bound2 = 1.0 / (HIDDEN ** 0.5)
    w1 = jax.random.uniform(k1, (HIDDEN, IN_FEATURES), jnp.float32, -bound1, bound1)
    b1 = jax.random.uniform(k2, (HIDDEN,), jnp.float32, -bound1, bound1)
    w2 = jax.random.uniform(k3, (OUT_FEATURES, HIDDEN), jnp.float32, -bound2, bound2)
    b2 = jax.random.uniform(k4, (OUT_FEATURES,), jnp.float32, -bound2, bound2)
    return w1, b1, w2, b2


def _reference(features, w1, b1, w2, b2):
    c, h, w = features.shape
    x = features.reshape(c, h * w).T.astype(jnp.float32)
    x = jnp.maximum(x @ w1.T + b1, 0.0)
    x = jax.nn.sigmoid(x @ w2.T + b2)
    return jnp.transpose(x.reshape(h, w, -1), (2, 0, 1))


if __name__ == "__main__":
    key = jax.random.PRNGKey(0)
    kf, kp = jax.random.split(key)
    w1, b1, w2, b2 = _init_params(kp)

    # Case 1: even spatial size (N = 256 -> two 128-lane grid steps).
    H, W = 16, 16
    features = jax.random.normal(kf, (IN_FEATURES, H, W), jnp.float32)
    out = jax.block_until_ready(mlp_model_forward(features, w1, b1, w2, b2))
    ref = _reference(features, w1, b1, w2, b2)
    assert out.shape == (1, H, W), out.shape
    assert jnp.allclose(out, ref, atol=1e-5, rtol=1e-5), float(jnp.max(jnp.abs(out - ref)))

    # Case 2: ragged spatial size (exercises the padless partial edge block).
    H2, W2 = 17, 13
    features2 = jax.random.normal(jax.random.PRNGKey(1), (IN_FEATURES, H2, W2), jnp.float32)
    out2 = jax.block_until_ready(mlp_model_forward(features2, w1, b1, w2, b2))
    ref2 = _reference(features2, w1, b1, w2, b2)
    assert out2.shape == (1, H2, W2), out2.shape
    assert jnp.allclose(out2, ref2, atol=1e-5, rtol=1e-5), float(jnp.max(jnp.abs(out2 - ref2)))

    print("KERNEL_OK")
</pallas_src>

<mosaic_0001>
module attributes {stable_mosaic.version = 11 : i64} {
  func.func @_mlp_kernel(%arg0: i32, %arg1: memref<384x128xf32, #tpu.memory_space<vmem>>, %arg2: memref<16x384xf32, #tpu.memory_space<vmem>>, %arg3: memref<16x1xf32, #tpu.memory_space<vmem>>, %arg4: memref<16x1xf32, #tpu.memory_space<vmem>>, %arg5: memref<1x1xf32, #tpu.memory_space<vmem>>, %arg6: memref<1x128xf32, #tpu.memory_space<vmem>>) attributes {dimension_semantics = [#tpu.dimension_semantics<parallel>], iteration_bounds = array<i64: 2>, scalar_prefetch = 0 : i64, scratch_operands = 0 : i64, tpu.core_type = #tpu.core_type<tc>, window_params = [{transform_indices = @transform_0, window_bounds = array<i64: 384, 128>}, {pipeline_mode = #tpu.pipeline_mode<synchronous>, transform_indices = @transform_1, window_bounds = array<i64: 16, 384>}, {pipeline_mode = #tpu.pipeline_mode<synchronous>, transform_indices = @transform_2, window_bounds = array<i64: 16, 1>}, {pipeline_mode = #tpu.pipeline_mode<synchronous>, transform_indices = @transform_3, window_bounds = array<i64: 16, 1>}, {pipeline_mode = #tpu.pipeline_mode<synchronous>, transform_indices = @transform_4, window_bounds = array<i64: 1, 1>}, {transform_indices = @transform_5, window_bounds = array<i64: 1, 128>}]} {
    %c0 = arith.constant 0 : index
    %c0_0 = arith.constant 0 : index
    %0 = vector.load %arg2[%c0, %c0_0] : memref<16x384xf32, #tpu.memory_space<vmem>>, vector<16x384xf32>
    %c0_1 = arith.constant 0 : index
    %c0_2 = arith.constant 0 : index
    %1 = vector.load %arg1[%c0_1, %c0_2] : memref<384x128xf32, #tpu.memory_space<vmem>>, vector<384x128xf32>
    %cst = arith.constant dense<0.000000e+00> : vector<16x128xf32>
    %2 = tpu.matmul %0, %1, %cst {dimension_numbers = #tpu.dot_dimension_numbers<[1], [0], [0], [1], [0, 0, 1, 1], [], []>} : vector<16x384xf32>, vector<384x128xf32>, vector<16x128xf32> -> vector<16x128xf32>
    %c0_3 = arith.constant 0 : index
    %c0_4 = arith.constant 0 : index
    %3 = vector.load %arg3[%c0_3, %c0_4] : memref<16x1xf32, #tpu.memory_space<vmem>>, vector<16x1xf32>
    %4 = vector.broadcast %3 : vector<16x1xf32> to vector<16x128xf32>
    %5 = arith.addf %2, %4 : vector<16x128xf32>
    %cst_5 = arith.constant 0.000000e+00 : f32
    %6 = vector.broadcast %cst_5 : f32 to vector<16x128xf32>
    %7 = arith.maximumf %5, %6 : vector<16x128xf32>
    %c0_6 = arith.constant 0 : index
    %c0_7 = arith.constant 0 : index
    %8 = vector.load %arg4[%c0_6, %c0_7] : memref<16x1xf32, #tpu.memory_space<vmem>>, vector<16x1xf32>
    %9 = vector.broadcast %8 : vector<16x1xf32> to vector<16x128xf32>
    %10 = arith.mulf %7, %9 : vector<16x128xf32>
    %cst_8 = arith.constant dense<0.000000e+00> : vector<128xf32>
    %11 = vector.multi_reduction <add>, %10, %cst_8 [0] : vector<16x128xf32> to vector<128xf32>
    %12 = vector.shape_cast %11 : vector<128xf32> to vector<1x128xf32>
    %c0_9 = arith.constant 0 : index
    %c0_10 = arith.constant 0 : index
    %13 = vector.load %arg5[%c0_9, %c0_10] : memref<1x1xf32, #tpu.memory_space<vmem>>, vector<1x1xf32>
    %14 = vector.broadcast %13 : vector<1x1xf32> to vector<1x128xf32>
    %15 = arith.addf %12, %14 : vector<1x128xf32>
    %16 = arith.negf %15 : vector<1x128xf32>
    %17 = math.exp %16 : vector<1x128xf32>
    %cst_11 = arith.constant 1.000000e+00 : f32
    %18 = vector.broadcast %cst_11 : f32 to vector<1x128xf32>
    %19 = arith.addf %18, %17 : vector<1x128xf32>
    %20 = arith.divf %18, %19 : vector<1x128xf32>
    %c0_12 = arith.constant 0 : index
    %c0_13 = arith.constant 0 : index
    %21 = vector.load %arg6[%c0_12, %c0_13] : memref<1x128xf32, #tpu.memory_space<vmem>>, vector<1x128xf32>
    tpu.vector_store %arg6[%c0_12, %c0_13], %20 {strides = array<i32>} : memref<1x128xf32, #tpu.memory_space<vmem>>, vector<1x128xf32>,
    return
  }
  func.func @transform_0(%arg0: i32) -> (i32, i32) {
    %c0_i32 = arith.constant 0 : i32
    %c0_i32_0 = arith.constant 0 : i32
    return %c0_i32, %arg0 : i32, i32
  }
  func.func @transform_1(%arg0: i32) -> (i32, i32) {
    %c0_i32 = arith.constant 0 : i32
    %c0_i32_0 = arith.constant 0 : i32
    %c0_i32_1 = arith.constant 0 : i32
    return %c0_i32, %c0_i32_0 : i32, i32
  }
  func.func @transform_2(%arg0: i32) -> (i32, i32) {
    %c0_i32 = arith.constant 0 : i32
    %c0_i32_0 = arith.constant 0 : i32
    %c0_i32_1 = arith.constant 0 : i32
    return %c0_i32, %c0_i32_0 : i32, i32
  }
  func.func @transform_3(%arg0: i32) -> (i32, i32) {
    %c0_i32 = arith.constant 0 : i32
    %c0_i32_0 = arith.constant 0 : i32
    %c0_i32_1 = arith.constant 0 : i32
    return %c0_i32, %c0_i32_0 : i32, i32
  }
  func.func @transform_4(%arg0: i32) -> (i32, i32) {
    %c0_i32 = arith.constant 0 : i32
    %c0_i32_0 = arith.constant 0 : i32
    %c0_i32_1 = arith.constant 0 : i32
    return %c0_i32, %c0_i32_0 : i32, i32
  }
  func.func @transform_5(%arg0: i32) -> (i32, i32) {
    %c0_i32 = arith.constant 0 : i32
    %c0_i32_0 = arith.constant 0 : i32
    return %c0_i32, %arg0 : i32, i32
  }
}

</mosaic_0001>

<llo_original>
// kernel: mlp_model_forward.1
$region0: #{mlp_model_forward.1}
  #allocation0 [shape = 'u32[]', space=smem, size = 0x4, offset = 0x4, fixed_abs, tag = 'smem constant byte address 0x4 - core index']
  #allocation1 [shape = 'u32[72,128]{1,0:T(1,128)}', space=vmem, size = 0x9000, scoped, tag = 'internal scratch']
  #allocation2 [shape = 'f32[1,1]{1,0:T(1,128)S(1)}', space=vmem, size = 0x200, scoped, tag = 'scoped memory for mlp_model_forward.1']
  %s0 = inlined_call_operand.vmem [shape: f32[384,256], index: 0, kind: input, shape index: {}]
  %s1 = inlined_call_operand.vmem [shape: f32[16,384], index: 1, kind: input, shape index: {}]
  %s2 = inlined_call_operand.vmem [shape: f32[16,1], index: 2, kind: input, shape index: {}]
  %s3 = inlined_call_operand.vmem [shape: f32[16,1], index: 3, kind: input, shape index: {}]
  %s4 = inlined_call_operand.<no memory space> [shape: f32[1,1], index: 4, kind: input, shape index: {}]
  %s5 = inlined_call_operand.vmem [shape: f32[1,256], index: 5, kind: output, shape index: {}]
  %s6 = sld [smem:[#allocation0]]
  $region91: #{mlp_model_forward.1} parent=0
    _
  %s8 = ssub.s32 1, %s6
  %s9 = scalar_select 0, %s8, %s6
  %v10 = vstv %s4
  %11 = vst [vmem:[#allocation2] sm:$0x1] %v10
  $region1: #{mlp_model_forward.1} parent=0
    #allocation3 [shape = 'u8[393216]{0}', space=vmem, size = 0x60000, scoped, tag = 'input window, operand 0']
    loop: start=0, step=1, limit=4
    $region2: #{mlp_model_forward.1} parent=1 // loop_pre_header
      _
    $region3: #{mlp_model_forward.1} parent=1 // loop_header
      %s13 = sphi 0, %s17
      %p14 = scmp.ge.s32.totalorder %s13, 4
      %s23 = sphi 0, %s25
      %s26 = sphi 0, %s23
      %s27 = sphi 0, %s26
      %s43 = sphi 0, %s27
      %s47 = sphi 0, %s47
      %s49 = sphi 0, %s47
      %s50 = sphi 0, %s49
      %s64 = sphi 0, %s50
      %s68 = sphi 0, %s68
      %s70 = sphi 0, %s68
      %s71 = sphi 0, %s70
      %s85 = sphi 0, %s71
      %s89 = sphi 0, %s89
      %s91 = sphi 0, %s89
      %s92 = sphi 0, %s91
      %s106 = sphi 0, %s92
      %s110 = sphi 0, %s110
      %s112 = sphi 0, %s110
      %s113 = sphi 0, %s112
      %s127 = sphi 0, %s113
      %s133 = sphi 0, %s135
      %s136 = sphi 0, %s133
      %s137 = sphi 0, %s136
      %s153 = sphi 0, %s137
    $region4: #{mlp_model_forward.1} parent=1 // loop_header_branch
      %16 = sbr.rel (%p14) target = $region8
    $region5: #{mlp_model_forward.1} parent=1 // loop_body
      %s18 = ssub.s32 %s13, 1
      %s19 = ssub.s32 %s13, 2
      %s20 = sadd.s32 %s13, 1
      %s21 = ssub.s32 %s13, %s20
      %p22 = scmp.eq.s32.totalorder %s21, 0
      %s24 = sadd.s32 %s23, 1
      %s25 = scalar_select %p22, %s23, %s24
      %p28 = pneg %p22
      %p29 = scmp.eq.s32.totalorder %s13, 1
      %p30 = por %p28, %p29
      %p31 = scmp.ne.s32.totalorder %s23, %s26
      %p32 = scmp.eq.s32.totalorder %s13, 0
      %p33 = por %p31, %p32
      %p34 = scmp.ne.s32.totalorder %s23, %s26
      %p35 = scmp.eq.s32.totalorder %s18, 1
      %p36 = por %p34, %p35
      %p37 = scmp.ne.s32.totalorder %s26, %s27
      %p38 = scmp.eq.s32.totalorder %s18, 0
      %p39 = por %p37, %p38
      %p40 = scmp.ne.s32.totalorder %s26, %s27
      %p41 = scmp.eq.s32.totalorder %s19, 1
      %p42 = por %p40, %p41
      %p44 = scmp.ne.s32.totalorder %s27, %s43
      %p45 = scmp.eq.s32.totalorder %s19, 0
      %p46 = por %p44, %p45
      %s48 = sadd.s32 %s47, 1
      %p51 = scmp.eq.s32.totalorder %s13, 1
      %p52 = scmp.ne.s32.totalorder %s47, %s49
      %p53 = scmp.eq.s32.totalorder %s13, 0
      %p54 = por %p52, %p53
      %p55 = scmp.ne.s32.totalorder %s47, %s49
      %p56 = scmp.eq.s32.totalorder %s18, 1
      %p57 = por %p55, %p56
      %p58 = scmp.ne.s32.totalorder %s49, %s50
      %p59 = scmp.eq.s32.totalorder %s18, 0
      %p60 = por %p58, %p59
      %p61 = scmp.ne.s32.totalorder %s49, %s50
      %p62 = scmp.eq.s32.totalorder %s19, 1
      %p63 = por %p61, %p62
      %p65 = scmp.ne.s32.totalorder %s50, %s64
      %p66 = scmp.eq.s32.totalorder %s19, 0
      %p67 = por %p65, %p66
      %s69 = sadd.s32 %s68, 1
      %p72 = scmp.eq.s32.totalorder %s13, 1
      %p73 = scmp.ne.s32.totalorder %s68, %s70
      %p74 = scmp.eq.s32.totalorder %s13, 0
      %p75 = por %p73, %p74
      %p76 = scmp.ne.s32.totalorder %s68, %s70
      %p77 = scmp.eq.s32.totalorder %s18, 1
      %p78 = por %p76, %p77
      %p79 = scmp.ne.s32.totalorder %s70, %s71
      %p80 = scmp.eq.s32.totalorder %s18, 0
      %p81 = por %p79, %p80
      %p82 = scmp.ne.s32.totalorder %s70, %s71
      %p83 = scmp.eq.s32.totalorder %s19, 1
      %p84 = por %p82, %p83
      %p86 = scmp.ne.s32.totalorder %s71, %s85
      %p87 = scmp.eq.s32.totalorder %s19, 0
      %p88 = por %p86, %p87
      %s90 = sadd.s32 %s89, 1
      %p93 = scmp.eq.s32.totalorder %s13, 1
      %p94 = scmp.ne.s32.totalorder %s89, %s91
      %p95 = scmp.eq.s32.totalorder %s13, 0
      %p96 = por %p94, %p95
      %p97 = scmp.ne.s32.totalorder %s89, %s91
      %p98 = scmp.eq.s32.totalorder %s18, 1
      %p99 = por %p97, %p98
      %p100 = scmp.ne.s32.totalorder %s91, %s92
      %p101 = scmp.eq.s32.totalorder %s18, 0
      %p102 = por %p100, %p101
      %p103 = scmp.ne.s32.totalorder %s91, %s92
      %p104 = scmp.eq.s32.totalorder %s19, 1
      %p105 = por %p103, %p104
      %p107 = scmp.ne.s32.totalorder %s92, %s106
      %p108 = scmp.eq.s32.totalorder %s19, 0
      %p109 = por %p107, %p108
      %s111 = sadd.s32 %s110, 1
      %p114 = scmp.eq.s32.totalorder %s13, 1
      %p115 = scmp.ne.s32.totalorder %s110, %s112
      %p116 = scmp.eq.s32.totalorder %s13, 0
      %p117 = por %p115, %p116
      %p118 = scmp.ne.s32.totalorder %s110, %s112
      %p119 = scmp.eq.s32.totalorder %s18, 1
      %p120 = por %p118, %p119
      %p121 = scmp.ne.s32.totalorder %s112, %s113
      %p122 = scmp.eq.s32.totalorder %s18, 0
      %p123 = por %p121, %p122
      %p124 = scmp.ne.s32.totalorder %s112, %s113
      %p125 = scmp.eq.s32.totalorder %s19, 1
      %p126 = por %p124, %p125
      %p128 = scmp.ne.s32.totalorder %s113, %s127
      %p129 = scmp.eq.s32.totalorder %s19, 0
      %p130 = por %p128, %p129
      %s131 = ssub.s32 %s13, %s20
      %p132 = scmp.eq.s32.totalorder %s131, 0
      %s134 = sadd.s32 %s133, 1
      %s135 = scalar_select %p132, %s133, %s134
      %p138 = pneg %p132
      %p139 = scmp.eq.s32.totalorder %s13, 1
      %p140 = por %p138, %p139
      %p141 = scmp.ne.s32.totalorder %s133, %s136
      %p142 = scmp.eq.s32.totalorder %s13, 0
      %p143 = por %p141, %p142
      %p144 = scmp.ne.s32.totalorder %s133, %s136
      %p145 = scmp.eq.s32.totalorder %s18, 1
      %p146 = por %p144, %p145
      %p147 = scmp.ne.s32.totalorder %s136, %s137
      %p148 = scmp.eq.s32.totalorder %s18, 0
      %p149 = por %p147, %p148
      %p150 = scmp.ne.s32.totalorder %s136, %s137
      %p151 = scmp.eq.s32.totalorder %s19, 1
      %p152 = por %p150, %p151
      %p154 = scmp.ne.s32.totalorder %s137, %s153
      %p155 = scmp.eq.s32.totalorder %s19, 0
      %p156 = por %p154, %p155
      %p157 = scmp.le.s32.totalorder 1, %s13
      %p158 = scmp.lt.s32.totalorder %s13, 3
      %p159 = pnand %p157, %p158
      %p160 = pneg %p159
      // Predicated region
      $region9: #{mlp_model_forward.1} parent=5 // pred_check
        _
      $region10: #{mlp_model_forward.1} parent=5 // pred_check_branch
        %162 = sbr.rel (%p159) target = $region12
      $region11: #{mlp_model_forward.1} parent=5 // pred_region
        %s163 = ssub.s32 %s13, 1
        // Predicated region
        $region13: #{mlp_model_forward.1} parent=11 // pred_check
          %p164 = pneg %p60
        $region14: #{mlp_model_forward.1} parent=11 // pred_check_branch
          %166 = sbr.rel (%p164) target = $region16
        $region15: #{mlp_model_forward.1} parent=11 // pred_region
          _
        $region16: #{mlp_model_forward.1} parent=11 // pred_fallthru
          _
        // Predicated region
        $region17: #{mlp_model_forward.1} parent=11 // pred_check
          %p167 = pneg %p81
        $region18: #{mlp_model_forward.1} parent=11 // pred_check_branch
          %169 = sbr.rel (%p167) target = $region20
        $region19: #{mlp_model_forward.1} parent=11 // pred_region
          _
        $region20: #{mlp_model_forward.1} parent=11 // pred_fallthru
          _
        // Predicated region
        $region21: #{mlp_model_forward.1} parent=11 // pred_check
          %p170 = pneg %p102
        $region22: #{mlp_model_forward.1} parent=11 // pred_check_branch
          %172 = sbr.rel (%p170) target = $region24
        $region23: #{mlp_model_forward.1} parent=11 // pred_region
          _
        $region24: #{mlp_model_forward.1} parent=11 // pred_fallthru
          _
        // Predicated region
        $region25: #{mlp_model_forward.1} parent=11 // pred_check
          %p173 = pneg %p123
        $region26: #{mlp_model_forward.1} parent=11 // pred_check_branch
          %175 = sbr.rel (%p173) target = $region28
        $region27: #{mlp_model_forward.1} parent=11 // pred_region
          _
        $region28: #{mlp_model_forward.1} parent=11 // pred_fallthru
          _
      $region12: #{mlp_model_forward.1} parent=5 // pred_fallthru
        _
      %p176 = scmp.lt.s32.totalorder %s13, 2
      // Predicated region
      $region29: #{mlp_model_forward.1} parent=5 // pred_check
        %p177 = pneg %p176
      $region30: #{mlp_model_forward.1} parent=5 // pred_check_branch
        %179 = sbr.rel (%p177) target = $region32
      $region31: #{mlp_model_forward.1} parent=5 // pred_region
        // Predicated region
        $region33: #{mlp_model_forward.1} parent=31 // pred_check
          %p180 = pneg %p33
        $region34: #{mlp_model_forward.1} parent=31 // pred_check_branch
          %182 = sbr.rel (%p180) target = $region36
        $region35: #{mlp_model_forward.1} parent=31 // pred_region
          %s183 = sand.u32 %s23, 1
          %s184 = sand.u32 %s23, 1
          %s185 = smul.addr %s184, 384
          %s186 = scalar_lea.vmem [#allocation3], %s185
          %s187 = smul.addr %s13, 8
          %s188 = scalar_lea.vmem %s0, %s187
          // Predicated region
          $region37: #{mlp_model_forward.1} parent=35 // pred_check
            _
          $region38: #{mlp_model_forward.1} parent=35 // pred_check_branch
            %190 = sbr.rel (0) target = $region40
          $region39: #{mlp_model_forward.1} parent=35 // pred_region
            // Predicated region
            $region41: #{mlp_model_forward.1} parent=39 // pred_check
              _
            $region42: #{mlp_model_forward.1} parent=39 // pred_check_branch
              %192 = sbr.rel (0) target = $region44
            $region43: #{mlp_model_forward.1} parent=39 // pred_region
              // Predicated region
              $region56: #{mlp_model_forward.1} parent=43 // pred_check
                _
              $region57: #{mlp_model_forward.1} parent=43 // pred_check_branch
                %302 = sbr.rel (0) target = $region59
              $region58: #{mlp_model_forward.1} parent=43 // pred_region
                loop: start=0, step=1, limit=1
                $region60: #{mlp_model_forward.1} parent=58 // loop_pre_header
                  _
                $region61: #{mlp_model_forward.1} parent=58 // loop_header
                  %s304 = sphi 0, %s308
                  %p305 = scmp.ge.s32.totalorder %s304, 1
                  %s309 = sphi %s188, %s188
                  %s310 = sphi %s186, %s186
                $region62: #{mlp_model_forward.1} parent=58 // loop_header_branch
                  %307 = sbr.rel (%p305) target = $region66
                $region63: #{mlp_model_forward.1} parent=58 // loop_body
                  %v311 = vld [vmem:[%s309] sm:$0xff]
                  %312 = vst [vmem:[%s310] sm:$0xff] %v311
                  %v313 = vld [vmem:[%s309 + $0x10] sm:$0xff]
                  %314 = vst [vmem:[%s310 + $0x8] sm:$0xff] %v313
                  %v315 = vld [vmem:[%s309 + $0x20] sm:$0xff]
                  %316 = vst [vmem:[%s310 + $0x10] sm:$0xff] %v315
                  %v317 = vld [vmem:[%s309 + $0x30] sm:$0xff]
                  %318 = vst [vmem:[%s310 + $0x18] sm:$0xff] %v317
                  %v319 = vld [vmem:[%s309 + $0x40] sm:$0xff]
                  %320 = vst [vmem:[%s310 + $0x20] sm:$0xff] %v319
                  %v321 = vld [vmem:[%s309 + $0x50] sm:$0xff]
                  %322 = vst [vmem:[%s310 + $0x28] sm:$0xff] %v321
                  %v323 = vld [vmem:[%s309 + $0x60] sm:$0xff]
                  %324 = vst [vmem:[%s310 + $0x30] sm:$0xff] %v323
                  %v325 = vld [vmem:[%s309 + $0x70] sm:$0xff]
                  %326 = vst [vmem:[%s310 + $0x38] sm:$0xff] %v325
                  %v327 = vld [vmem:[%s309 + $0x80] sm:$0xff]
                  %328 = vst [vmem:[%s310 + $0x40] sm:$0xff] %v327
                  %v329 = vld [vmem:[%s309 + $0x90] sm:$0xff]
                  %330 = vst [vmem:[%s310 + $0x48] sm:$0xff] %v329
                  %v331 = vld [vmem:[%s309 + $0xa0] sm:$0xff]
                  %332 = vst [vmem:[%s310 + $0x50] sm:$0xff] %v331
                  %v333 = vld [vmem:[%s309 + $0xb0] sm:$0xff]
                  %334 = vst [vmem:[%s310 + $0x58] sm:$0xff] %v333
                  %v335 = vld [vmem:[%s309 + $0xc0] sm:$0xff]
                  %336 = vst [vmem:[%s310 + $0x60] sm:$0xff] %v335
                  %v337 = vld [vmem:[%s309 + $0xd0] sm:$0xff]
                  %338 = vst [vmem:[%s310 + $0x68] sm:$0xff] %v337
                  %v339 = vld [vmem:[%s309 + $0xe0] sm:$0xff]
                  %340 = vst [vmem:[%s310 + $0x70] sm:$0xff] %v339
                  %v341 = vld [vmem:[%s309 + $0xf0] sm:$0xff]
                  %342 = vst [vmem:[%s310 + $0x78] sm:$0xff] %v341
                  %v343 = vld [vmem:[%s309 + $0x100] sm:$0xff]
                  %344 = vst [vmem:[%s310 + $0x80] sm:$0xff] %v343
                  %v345 = vld [vmem:[%s309 + $0x110] sm:$0xff]
                  %346 = vst [vmem:[%s310 + $0x88] sm:$0xff] %v345
                  %v347 = vld [vmem:[%s309 + $0x120] sm:$0xff]
                  %348 = vst [vmem:[%s310 + $0x90] sm:$0xff] %v347
                  %v349 = vld [vmem:[%s309 + $0x130] sm:$0xff]
                  %350 = vst [vmem:[%s310 + $0x98] sm:$0xff] %v349
                  %v351 = vld [vmem:[%s309 + $0x140] sm:$0xff]
                  %352 = vst [vmem:[%s310 + $0xa0] sm:$0xff] %v351
                  %v353 = vld [vmem:[%s309 + $0x150] sm:$0xff]
                  %354 = vst [vmem:[%s310 + $0xa8] sm:$0xff] %v353
                  %v355 = vld [vmem:[%s309 + $0x160] sm:$0xff]
                  %356 = vst [vmem:[%s310 + $0xb0] sm:$0xff] %v355
                  %v357 = vld [vmem:[%s309 + $0x170] sm:$0xff]
                  %358 = vst [vmem:[%s310 + $0xb8] sm:$0xff] %v357
                  %v359 = vld [vmem:[%s309 + $0x180] sm:$0xff]
                  %360 = vst [vmem:[%s310 + $0xc0] sm:$0xff] %v359
                  %v361 = vld [vmem:[%s309 + $0x190] sm:$0xff]
                  %362 = vst [vmem:[%s310 + $0xc8] sm:$0xff] %v361
                  %v363 = vld [vmem:[%s309 + $0x1a0] sm:$0xff]
                  %364 = vst [vmem:[%s310 + $0xd0] sm:$0xff] %v363
                  %v365 = vld [vmem:[%s309 + $0x1b0] sm:$0xff]
                  %366 = vst [vmem:[%s310 + $0xd8] sm:$0xff] %v365
                  %v367 = vld [vmem:[%s309 + $0x1c0] sm:$0xff]
                  %368 = vst [vmem:[%s310 + $0xe0] sm:$0xff] %v367
                  %v369 = vld [vmem:[%s309 + $0x1d0] sm:$0xff]
                  %370 = vst [vmem:[%s310 + $0xe8] sm:$0xff] %v369
                  %v371 = vld [vmem:[%s309 + $0x1e0] sm:$0xff]
                  %372 = vst [vmem:[%s310 + $0xf0] sm:$0xff] %v371
                  %v373 = vld [vmem:[%s309 + $0x1f0] sm:$0xff]
                  %374 = vst [vmem:[%s310 + $0xf8] sm:$0xff] %v373
                  %v375 = vld [vmem:[%s309 + $0x200] sm:$0xff]
                  %376 = vst [vmem:[%s310 + $0x100] sm:$0xff] %v375
                  %v377 = vld [vmem:[%s309 + $0x210] sm:$0xff]
                  %378 = vst [vmem:[%s310 + $0x108] sm:$0xff] %v377
                  %v379 = vld [vmem:[%s309 + $0x220] sm:$0xff]
                  %380 = vst [vmem:[%s310 + $0x110] sm:$0xff] %v379
                  %v381 = vld [vmem:[%s309 + $0x230] sm:$0xff]
                  %382 = vst [vmem:[%s310 + $0x118] sm:$0xff] %v381
                  %v383 = vld [vmem:[%s309 + $0x240] sm:$0xff]
                  %384 = vst [vmem:[%s310 + $0x120] sm:$0xff] %v383
                  %v385 = vld [vmem:[%s309 + $0x250] sm:$0xff]
                  %386 = vst [vmem:[%s310 + $0x128] sm:$0xff] %v385
                  %v387 = vld [vmem:[%s309 + $0x260] sm:$0xff]
                  %388 = vst [vmem:[%s310 + $0x130] sm:$0xff] %v387
                  %v389 = vld [vmem:[%s309 + $0x270] sm:$0xff]
                  %390 = vst [vmem:[%s310 + $0x138] sm:$0xff] %v389
                  %v391 = vld [vmem:[%s309 + $0x280] sm:$0xff]
                  %392 = vst [vmem:[%s310 + $0x140] sm:$0xff] %v391
                  %v393 = vld [vmem:[%s309 + $0x290] sm:$0xff]
                  %394 = vst [vmem:[%s310 + $0x148] sm:$0xff] %v393
                  %v395 = vld [vmem:[%s309 + $0x2a0] sm:$0xff]
                  %396 = vst [vmem:[%s310 + $0x150] sm:$0xff] %v395
                  %v397 = vld [vmem:[%s309 + $0x2b0] sm:$0xff]
                  %398 = vst [vmem:[%s310 + $0x158] sm:$0xff] %v397
                  %v399 = vld [vmem:[%s309 + $0x2c0] sm:$0xff]
                  %400 = vst [vmem:[%s310 + $0x160] sm:$0xff] %v399
                  %v401 = vld [vmem:[%s309 + $0x2d0] sm:$0xff]
                  %402 = vst [vmem:[%s310 + $0x168] sm:$0xff] %v401
                  %v403 = vld [vmem:[%s309 + $0x2e0] sm:$0xff]
                  %404 = vst [vmem:[%s310 + $0x170] sm:$0xff] %v403
                  %v405 = vld [vmem:[%s309 + $0x2f0] sm:$0xff]
                  %406 = vst [vmem:[%s310 + $0x178] sm:$0xff] %v405
                $region64: #{mlp_model_forward.1} parent=58 // loop_footer
                  %s308 = sadd.s32 1, %s304
                $region65: #{mlp_model_forward.1} parent=58 // loop_footer_branch
                  %303 = sbr.rel target = $region61
                $region66: #{mlp_model_forward.1} parent=58 // loop_exit
                  _
              $region59: #{mlp_model_forward.1} parent=43 // pred_fallthru
                _
              // Predicated region
              $region67: #{mlp_model_forward.1} parent=43 // pred_check
                _
              $region68: #{mlp_model_forward.1} parent=43 // pred_check_branch
                %408 = sbr.rel target = $region70
              $region69: #{mlp_model_forward.1} parent=43 // pred_region
                _
              $region70: #{mlp_model_forward.1} parent=43 // pred_fallthru
                _
            $region44: #{mlp_model_forward.1} parent=39 // pred_fallthru
              _
            // Predicated region
            $region45: #{mlp_model_forward.1} parent=39 // pred_check
              _
            $region46: #{mlp_model_forward.1} parent=39 // pred_check_branch
              %194 = sbr.rel target = $region48
            $region47: #{mlp_model_forward.1} parent=39 // pred_region
              %s196 = ssub.s32 256, 1
              loop: start=0, step=1, limit=1
              $region49: #{mlp_model_forward.1} parent=47 // loop_pre_header
                _
              $region50: #{mlp_model_forward.1} parent=47 // loop_header
                %s198 = sphi 0, %s202
                %p199 = scmp.ge.s32.totalorder %s198, 1
                %s203 = sphi %s188, %s188
                %s204 = sphi %s186, %s186
              $region51: #{mlp_model_forward.1} parent=47 // loop_header_branch
                %201 = sbr.rel (%p199) target = $region55
              $region52: #{mlp_model_forward.1} parent=47 // loop_body
                %v205 = vld [vmem:[%s203] sm:%s196]
                %206 = vst [vmem:[%s204] sm:%s196] %v205
                %v207 = vld [vmem:[%s203 + $0x10] sm:%s196]
                %208 = vst [vmem:[%s204 + $0x8] sm:%s196] %v207
                %v209 = vld [vmem:[%s203 + $0x20] sm:%s196]
                %210 = vst [vmem:[%s204 + $0x10] sm:%s196] %v209
                %v211 = vld [vmem:[%s203 + $0x30] sm:%s196]
                %212 = vst [vmem:[%s204 + $0x18] sm:%s196] %v211
                %v213 = vld [vmem:[%s203 + $0x40] sm:%s196]
                %214 = vst [vmem:[%s204 + $0x20] sm:%s196] %v213
                %v215 = vld [vmem:[%s203 + $0x50] sm:%s196]
                %216 = vst [vmem:[%s204 + $0x28] sm:%s196] %v215
                %v217 = vld [vmem:[%s203 + $0x60] sm:%s196]
                %218 = vst [vmem:[%s204 + $0x30] sm:%s196] %v217
                %v219 = vld [vmem:[%s203 + $0x70] sm:%s196]
                %220 = vst [vmem:[%s204 + $0x38] sm:%s196] %v219
                %v221 = vld [vmem:[%s203 + $0x80] sm:%s196]
                %222 = vst [vmem:[%s204 + $0x40] sm:%s196] %v221
                %v223 = vld [vmem:[%s203 + $0x90] sm:%s196]
                %224 = vst [vmem:[%s204 + $0x48] sm:%s196] %v223
                %v225 = vld [vmem:[%s203 + $0xa0] sm:%s196]
                %226 = vst [vmem:[%s204 + $0x50] sm:%s196] %v225
                %v227 = vld [vmem:[%s203 + $0xb0] sm:%s196]
                %228 = vst [vmem:[%s204 + $0x58] sm:%s196] %v227
                %v229 = vld [vmem:[%s203 + $0xc0] sm:%s196]
                %230 = vst [vmem:[%s204 + $0x60] sm:%s196] %v229
                %v231 = vld [vmem:[%s203 + $0xd0] sm:%s196]
                %232 = vst [vmem:[%s204 + $0x68] sm:%s196] %v231
                %v233 = vld [vmem:[%s203 + $0xe0] sm:%s196]
                %234 = vst [vmem:[%s204 + $0x70] sm:%s196] %v233
                %v235 = vld [vmem:[%s203 + $0xf0] sm:%s196]
                %236 = vst [vmem:[%s204 + $0x78] sm:%s196] %v235
                %v237 = vld [vmem:[%s203 + $0x100] sm:%s196]
                %238 = vst [vmem:[%s204 + $0x80] sm:%s196] %v237
                %v239 = vld [vmem:[%s203 + $0x110] sm:%s196]
                %240 = vst [vmem:[%s204 + $0x88] sm:%s196] %v239
                %v241 = vld [vmem:[%s203 + $0x120] sm:%s196]
                %242 = vst [vmem:[%s204 + $0x90] sm:%s196] %v241
                %v243 = vld [vmem:[%s203 + $0x130] sm:%s196]
                %244 = vst [vmem:[%s204 + $0x98] sm:%s196] %v243
                %v245 = vld [vmem:[%s203 + $0x140] sm:%s196]
                %246 = vst [vmem:[%s204 + $0xa0] sm:%s196] %v245
                %v247 = vld [vmem:[%s203 + $0x150] sm:%s196]
                %248 = vst [vmem:[%s204 + $0xa8] sm:%s196] %v247
                %v249 = vld [vmem:[%s203 + $0x160] sm:%s196]
                %250 = vst [vmem:[%s204 + $0xb0] sm:%s196] %v249
                %v251 = vld [vmem:[%s203 + $0x170] sm:%s196]
                %252 = vst [vmem:[%s204 + $0xb8] sm:%s196] %v251
                %v253 = vld [vmem:[%s203 + $0x180] sm:%s196]
                %254 = vst [vmem:[%s204 + $0xc0] sm:%s196] %v253
                %v255 = vld [vmem:[%s203 + $0x190] sm:%s196]
                %256 = vst [vmem:[%s204 + $0xc8] sm:%s196] %v255
                %v257 = vld [vmem:[%s203 + $0x1a0] sm:%s196]
                %258 = vst [vmem:[%s204 + $0xd0] sm:%s196] %v257
                %v259 = vld [vmem:[%s203 + $0x1b0] sm:%s196]
                %260 = vst [vmem:[%s204 + $0xd8] sm:%s196] %v259
                %v261 = vld [vmem:[%s203 + $0x1c0] sm:%s196]
                %262 = vst [vmem:[%s204 + $0xe0] sm:%s196] %v261
                %v263 = vld [vmem:[%s203 + $0x1d0] sm:%s196]
                %264 = vst [vmem:[%s204 + $0xe8] sm:%s196] %v263
                %v265 = vld [vmem:[%s203 + $0x1e0] sm:%s196]
                %266 = vst [vmem:[%s204 + $0xf0] sm:%s196] %v265
                %v267 = vld [vmem:[%s203 + $0x1f0] sm:%s196]
                %268 = vst [vmem:[%s204 + $0xf8] sm:%s196] %v267
                %v269 = vld [vmem:[%s203 + $0x200] sm:%s196]
                %270 = vst [vmem:[%s204 + $0x100] sm:%s196] %v269
                %v271 = vld [vmem:[%s203 + $0x210] sm:%s196]
                %272 = vst [vmem:[%s204 + $0x108] sm:%s196] %v271
                %v273 = vld [vmem:[%s203 + $0x220] sm:%s196]
                %274 = vst [vmem:[%s204 + $0x110] sm:%s196] %v273
                %v275 = vld [vmem:[%s203 + $0x230] sm:%s196]
                %276 = vst [vmem:[%s204 + $0x118] sm:%s196] %v275
                %v277 = vld [vmem:[%s203 + $0x240] sm:%s196]
                %278 = vst [vmem:[%s204 + $0x120] sm:%s196] %v277
                %v279 = vld [vmem:[%s203 + $0x250] sm:%s196]
                %280 = vst [vmem:[%s204 + $0x128] sm:%s196] %v279
                %v281 = vld [vmem:[%s203 + $0x260] sm:%s196]
                %282 = vst [vmem:[%s204 + $0x130] sm:%s196] %v281
                %v283 = vld [vmem:[%s203 + $0x270] sm:%s196]
                %284 = vst [vmem:[%s204 + $0x138] sm:%s196] %v283
                %v285 = vld [vmem:[%s203 + $0x280] sm:%s196]
                %286 = vst [vmem:[%s204 + $0x140] sm:%s196] %v285
                %v287 = vld [vmem:[%s203 + $0x290] sm:%s196]
                %288 = vst [vmem:[%s204 + $0x148] sm:%s196] %v287
                %v289 = vld [vmem:[%s203 + $0x2a0] sm:%s196]
                %290 = vst [vmem:[%s204 + $0x150] sm:%s196] %v289
                %v291 = vld [vmem:[%s203 + $0x2b0] sm:%s196]
                %292 = vst [vmem:[%s204 + $0x158] sm:%s196] %v291
                %v293 = vld [vmem:[%s203 + $0x2c0] sm:%s196]
                %294 = vst [vmem:[%s204 + $0x160] sm:%s196] %v293
                %v295 = vld [vmem:[%s203 + $0x2d0] sm:%s196]
                %296 = vst [vmem:[%s204 + $0x168] sm:%s196] %v295
                %v297 = vld [vmem:[%s203 + $0x2e0] sm:%s196]
                %298 = vst [vmem:[%s204 + $0x170] sm:%s196] %v297
                %v299 = vld [vmem:[%s203 + $0x2f0] sm:%s196]
                %300 = vst [vmem:[%s204 + $0x178] sm:%s196] %v299
              $region53: #{mlp_model_forward.1} parent=47 // loop_footer
                %s202 = sadd.s32 1, %s198
              $region54: #{mlp_model_forward.1} parent=47 // loop_footer_branch
                %197 = sbr.rel target = $region50
              $region55: #{mlp_model_forward.1} parent=47 // loop_exit
                _
            $region48: #{mlp_model_forward.1} parent=39 // pred_fallthru
              _
          $region40: #{mlp_model_forward.1} parent=35 // pred_fallthru
            _
          %409 = vnop
        $region36: #{mlp_model_forward.1} parent=31 // pred_fallthru
          _
      $region32: #{mlp_model_forward.1} parent=5 // pred_fallthru
        _
      %p410 = scmp.le.s32.totalorder 1, %s13
      %p411 = scmp.lt.s32.totalorder %s13, 3
      %p412 = pnand %p410, %p411
      %p413 = pneg %p412
      // Predicated region
      $region71: #{mlp_model_forward.1} parent=5 // pred_check
        _
      $region72: #{mlp_model_forward.1} parent=5 // pred_check_branch
        %415 = sbr.rel (%p412) target = $region74
      $region73: #{mlp_model_forward.1} parent=5 // pred_region
        %s416 = ssub.s32 %s13, 1
        %s417 = sand.u32 %s26, 1
        %s418 = sand.u32 %s26, 1
        %s419 = smul.addr %s418, 384
        %s420 = scalar_lea.vmem [#allocation3], %s419
        // Predicated region
        $region75: #{mlp_model_forward.1} parent=73 // pred_check
          %p421 = pneg %p39
        $region76: #{mlp_model_forward.1} parent=73 // pred_check_branch
          %423 = sbr.rel (%p421) target = $region78
        $region77: #{mlp_model_forward.1} parent=73 // pred_region
          _
        $region78: #{mlp_model_forward.1} parent=73 // pred_fallthru
          _
        %s424 = sand.u32 %s26, 1
        %s425 = sand.u32 %s26, 1
        %s426 = smul.addr %s425, 384
        %s427 = scalar_lea.vmem [#allocation3], %s426
        %p428 = pneg %p39
        %p429 = pneg %p36
        %p430 = pneg %p60
        %p431 = pneg %p57
        %p432 = pneg %p81
        %p433 = pneg %p78
        %p434 = pneg %p102
        %p435 = pneg %p99
        %p436 = pneg %p123
        %p437 = pneg %p120
        %p438 = pneg %p149
        %p439 = pneg %p146
        %p440 = scmp.lt.s32.totalorder %s18, 1
        %s441 = scalar_select %p440, %s18, 1
        %s442 = scalar_lea.vmem %s5, %s441
        %p443 = scmp.lt.s32.totalorder %s18, 1
        %s444 = scalar_select %p443, %s18, 1
        %s445 = scalar_lea.vmem %s5, %s444
        %v446 = vld [vmem:[%s1] sm:$0xff]
        %v447 = vld [vmem:[%s1 + $0x8] sm:$0xff]
        %v448 = vld [vmem:[%s1 + $0x10] sm:$0xff]
        %v449 = vld [vmem:[%s1 + $0x18] sm:$0xff]
        %v450 = vld [vmem:[%s1 + $0x20] sm:$0xff]
        %v451 = vld [vmem:[%s1 + $0x28] sm:$0xff]
        %v452 = vld [vmem:[%s420] sm:$0xff]
        %v453 = vld [vmem:[%s420 + $0x8] sm:$0xff]
        %v454 = vld [vmem:[%s420 + $0x10] sm:$0xff]
        %v455 = vld [vmem:[%s420 + $0x18] sm:$0xff]
        %v456 = vld [vmem:[%s420 + $0x20] sm:$0xff]
        %v457 = vld [vmem:[%s420 + $0x28] sm:$0xff]
        %v458 = vld [vmem:[%s420 + $0x30] sm:$0xff]
        %v459 = vld [vmem:[%s420 + $0x38] sm:$0xff]
        %v460 = vld [vmem:[%s420 + $0x40] sm:$0xff]
        %v461 = vld [vmem:[%s420 + $0x48] sm:$0xff]
        %v462 = vld [vmem:[%s420 + $0x50] sm:$0xff]
        %v463 = vld [vmem:[%s420 + $0x58] sm:$0xff]
        %v464 = vld [vmem:[%s420 + $0x60] sm:$0xff]
        %v465 = vld [vmem:[%s420 + $0x68] sm:$0xff]
        %v466 = vld [vmem:[%s420 + $0x70] sm:$0xff]
        %v467 = vld [vmem:[%s420 + $0x78] sm:$0xff]
        %v468 = vld [vmem:[%s420 + $0x80] sm:$0xff]
        %v469 = vld [vmem:[%s420 + $0x88] sm:$0xff]
        %v470 = vld [vmem:[%s420 + $0x90] sm:$0xff]
        %v471 = vld [vmem:[%s420 + $0x98] sm:$0xff]
        %v472 = vld [vmem:[%s420 + $0xa0] sm:$0xff]
        %v473 = vld [vmem:[%s420 + $0xa8] sm:$0xff]
        %v474 = vld [vmem:[%s420 + $0xb0] sm:$0xff]
        %v475 = vld [vmem:[%s420 + $0xb8] sm:$0xff]
        %v476 = vld [vmem:[%s420 + $0xc0] sm:$0xff]
        %v477 = vld [vmem:[%s420 + $0xc8] sm:$0xff]
        %v478 = vld [vmem:[%s420 + $0xd0] sm:$0xff]
        %v479 = vld [vmem:[%s420 + $0xd8] sm:$0xff]
        %v480 = vld [vmem:[%s420 + $0xe0] sm:$0xff]
        %v481 = vld [vmem:[%s420 + $0xe8] sm:$0xff]
        %v482 = vld [vmem:[%s420 + $0xf0] sm:$0xff]
        %v483 = vld [vmem:[%s420 + $0xf8] sm:$0xff]
        %v484 = vld [vmem:[%s420 + $0x100] sm:$0xff]
        %v485 = vld [vmem:[%s420 + $0x108] sm:$0xff]
        %v486 = vld [vmem:[%s420 + $0x110] sm:$0xff]
        %v487 = vld [vmem:[%s420 + $0x118] sm:$0xff]
        %v488 = vld [vmem:[%s420 + $0x120] sm:$0xff]
        %v489 = vld [vmem:[%s420 + $0x128] sm:$0xff]
        %v490 = vld [vmem:[%s420 + $0x130] sm:$0xff]
        %v491 = vld [vmem:[%s420 + $0x138] sm:$0xff]
        %v492 = vld [vmem:[%s420 + $0x140] sm:$0xff]
        %v493 = vld [vmem:[%s420 + $0x148] sm:$0xff]
        %v494 = vld [vmem:[%s420 + $0x150] sm:$0xff]
        %v495 = vld [vmem:[%s420 + $0x158] sm:$0xff]
        %v496 = vld [vmem:[%s420 + $0x160] sm:$0xff]
        %v497 = vld [vmem:[%s420 + $0x168] sm:$0xff]
        %v498 = vld [vmem:[%s420 + $0x170] sm:$0xff]
        %v499 = vld [vmem:[%s420 + $0x178] sm:$0xff]
        %v500 = vld [vmem:[%s2] sm:$0xff]
        %v501 = vld [vmem:[%s2 + $0x8] sm:$0xff]
        %503 = vset.pattern.permute.xlu0 0
        %504 = vperm.xlu0 %503, %v500
        %v505 = vpop.permute.xlu0 %504
        %508 = vset.pattern.permute.xlu0 0
        %509 = vperm.xlu0 %508, %v501
        %v510 = vpop.permute.xlu0 %509
        %512 = vmatpush.msra.mxu0 %v467
        %513 = vmatpush.msra.mxu0 %v466
        %514 = vmatpush.msra.mxu0 %v465
        %515 = vmatpush.msra.mxu0 %v464
        %516 = vmatpush.msra.mxu0 %v463
        %517 = vmatpush.msra.mxu0 %v462
        %518 = vmatpush.msra.mxu0 %v461
        %519 = vmatpush.msra.mxu0 %v460
        %520 = vmatpush.msra.mxu0 %v459
        %521 = vmatpush.msra.mxu0 %v458
        %522 = vmatpush.msra.mxu0 %v457
        %523 = vmatpush.msra.mxu0 %v456
        %524 = vmatpush.msra.mxu0 %v455
        %525 = vmatpush.msra.mxu0 %v454
        %526 = vmatpush.msra.mxu0 %v453
        %527 = vmatpush.msra.mxu0 %v452
        %528 = vmatmul.f32.gmra.mxu0 %v446
        %v529 = vpop.f32.mrf.mxu0
        %v530 = vadd.f32 %v505, %v529
        %531 = vmatmul.f32.gmra.mxu0 %v449
        %v532 = vpop.f32.mrf.mxu0
        %v533 = vadd.f32 %v510, %v532
        %534 = vdwg.mxu0
        %535 = vmatpush.msra.mxu0 %v483
        %536 = vmatpush.msra.mxu0 %v482
        %537 = vmatpush.msra.mxu0 %v481
        %538 = vmatpush.msra.mxu0 %v480
        %539 = vmatpush.msra.mxu0 %v479
        %540 = vmatpush.msra.mxu0 %v478
        %541 = vmatpush.msra.mxu0 %v477
        %542 = vmatpush.msra.mxu0 %v476
        %543 = vmatpush.msra.mxu0 %v475
        %544 = vmatpush.msra.mxu0 %v474
        %545 = vmatpush.msra.mxu0 %v473
        %546 = vmatpush.msra.mxu0 %v472
        %547 = vmatpush.msra.mxu0 %v471
        %548 = vmatpush.msra.mxu0 %v470
        %549 = vmatpush.msra.mxu0 %v469
        %550 = vmatpush.msra.mxu0 %v468
        %551 = vmatmul.f32.gmra.mxu0 %v447
        %v552 = vpop.f32.mrf.mxu0
        %v553 = vadd.f32 %v530, %v552
        %554 = vmatmul.f32.gmra.mxu0 %v450
        %v555 = vpop.f32.mrf.mxu0
        %v556 = vadd.f32 %v533, %v555
        %557 = vdwg.mxu0
        %558 = vmatpush.msra.mxu0 %v499
        %559 = vmatpush.msra.mxu0 %v498
        %560 = vmatpush.msra.mxu0 %v497
        %561 = vmatpush.msra.mxu0 %v496
        %562 = vmatpush.msra.mxu0 %v495
        %563 = vmatpush.msra.mxu0 %v494
        %564 = vmatpush.msra.mxu0 %v493
        %565 = vmatpush.msra.mxu0 %v492
        %566 = vmatpush.msra.mxu0 %v491
        %567 = vmatpush.msra.mxu0 %v490
        %568 = vmatpush.msra.mxu0 %v489
        %569 = vmatpush.msra.mxu0 %v488
        %570 = vmatpush.msra.mxu0 %v487
        %571 = vmatpush.msra.mxu0 %v486
        %572 = vmatpush.msra.mxu0 %v485
        %573 = vmatpush.msra.mxu0 %v484
        %574 = vmatmul.f32.gmra.mxu0 %v448
        %v575 = vpop.f32.mrf.mxu0
        %v576 = vadd.f32 %v553, %v575
        %577 = vmatmul.f32.gmra.mxu0 %v451
        %v578 = vpop.f32.mrf.mxu0
        %v579 = vadd.f32 %v556, %v578
        %580 = vdwg.mxu0
        %v581 = vmax.f32 %v576, 0.0
        %v582 = vmax.f32 %v579, 0.0
        %v583 = vld [vmem:[%s3] sm:$0xff]
        %v584 = vld [vmem:[%s3 + $0x8] sm:$0xff]
        %586 = vset.pattern.permute.xlu0 0
        %587 = vperm.xlu0 %586, %v583
        %v588 = vpop.permute.xlu0 %587
        %591 = vset.pattern.permute.xlu0 0
        %592 = vperm.xlu0 %591, %v584
        %v593 = vpop.permute.xlu0 %592
        %v595 = vmul.f32 %v581, %v588
        %v596 = vmul.f32 %v582, %v593
        %v597 = vadd.f32 %v595, %v596
        %v598 = vrot.slane %v597, 4
        %v599 = vadd.f32 %v597, %v598
        %v600 = vrot.slane %v599, 2
        %v601 = vadd.f32 %v599, %v600
        %v602 = vrot.slane %v601, 1
        %v603 = vadd.f32 %v601, %v602
        %v604 = vld [vmem:[#allocation2] sm:$0x1]
        %606 = vset.pattern.permute.xlu0 0
        %607 = vperm.xlu0 %606, %v604
        %v608 = vpop.permute.xlu0 %607
        %v610 = vperm.slane %v608, 0
        %v611 = vadd.f32 %v603, %v610
        %v612 = vxor.u32 %v611, 2147483648
        %v613 = vmul.f32 %v612, 1.442695
        %v614 = vpow.pop %v613
        %v615 = vadd.f32 %v614, 1.0
        %v616 = vrcp.pop %v615
        %v617 = vmul.f32 %v615, %v616
        %v618 = vsub.f32 1.0, %v617
        %v619 = vmul.f32 %v616, %v618
        %v620 = vadd.f32 %v616, %v619
        %vm621 = vweird.f32 %v615
        %vm622 = vweird.f32 %v616
        %vm623 = vmor %vm621, %vm622
        %v624 = vsel %vm623, %v616, %v620
        %v625 = vand.u32 2147483647, %v615
        %vm626 = vcmp.eq.f32.partialorder %v625, 8.507059e+37
        %v627 = vand.u32 %v615, 2147483648
        %v628 = vor.u32 1.1754944e-38, %v627
        %v629 = vsel %vm626, %v628, %v624
        %v630 = vmul.f32 1.0, %v629
        %631 = vst [vmem:[%s445] sm:$0x1] %v630
        %p632 = scmp.lt.s32.totalorder %s18, 1
        %s633 = scalar_select %p632, %s18, 1
        %s634 = scalar_lea.vmem %s5, %s633
        // Predicated region
        $region79: #{mlp_model_forward.1} parent=73 // pred_check
          %p635 = pneg %p146
        $region80: #{mlp_model_forward.1} parent=73 // pred_check_branch
          %637 = sbr.rel (%p635) target = $region82
        $region81: #{mlp_model_forward.1} parent=73 // pred_region
          _
        $region82: #{mlp_model_forward.1} parent=73 // pred_fallthru
          _
      $region74: #{mlp_model_forward.1} parent=5 // pred_fallthru
        _
      %p638 = scmp.le.s32.totalorder 2, %s13
      // Predicated region
      $region83: #{mlp_model_forward.1} parent=5 // pred_check
        %p639 = pneg %p638
      $region84: #{mlp_model_forward.1} parent=5 // pred_check_branch
        %641 = sbr.rel (%p639) target = $region86
      $region85: #{mlp_model_forward.1} parent=5 // pred_region
        %s642 = ssub.s32 %s13, 2
        // Predicated region
        $region87: #{mlp_model_forward.1} parent=85 // pred_check
          %p643 = pneg %p152
        $region88: #{mlp_model_forward.1} parent=85 // pred_check_branch
          %645 = sbr.rel (%p643) target = $region90
        $region89: #{mlp_model_forward.1} parent=85 // pred_region
          %p646 = scmp.lt.s32.totalorder %s19, 1
          %s647 = scalar_select %p646, %s19, 1
          %s648 = scalar_lea.vmem %s5, %s647
        $region90: #{mlp_model_forward.1} parent=85 // pred_fallthru
          _
      $region86: #{mlp_model_forward.1} parent=5 // pred_fallthru
        _
    $region6: #{mlp_model_forward.1} parent=1 // loop_footer
      %s17 = sadd.s32 1, %s13
    $region7: #{mlp_model_forward.1} parent=1 // loop_footer_branch
      %12 = sbr.rel target = $region3
    $region8: #{mlp_model_forward.1} parent=1 // loop_exit
      _

</llo_original>
